<compile_context>
chip_gen: v5e
topology: v5e:2x2
jax: 0.10.0
libtpu: 0.0.40
codegen_flags: <defaults>
</compile_context>

<pallas_src>
import jax
import jax.numpy as jnp
from jax import lax
from jax.experimental import pallas as pl
from jax.experimental.pallas import tpu as pltpu


def _rnn_kernel(x_ref, w_ih_ref, w_hh_ref, b_h_ref, w_out_ref, b_out_ref,
                out_ref):
    B, S, F = x_ref.shape
    Hp = w_hh_ref.shape[0]

    # ---- hoisted input projection: one lane-dense MXU matmul for all t ----
    # (B,S,F)->(B*S,F) is a major-dim collapse (lane/sublane tiling unchanged
    # at these sizes), so it does not materialize a VMEM copy.
    x2d = x_ref[...].reshape(B * S, F)
    pre = (jnp.dot(x2d, w_ih_ref[...], preferred_element_type=jnp.float32)
           + b_h_ref[...]).reshape(B, S, Hp)       # live value, stays in vregs

    # ---- serial recurrence, statically unrolled (S is small) ----
    # pre[:, t, :] with static t is a sublane select on a live value — no VMEM
    # round-trip on the serial h -> h chain.
    # TODO(synk): for S >~ 32 switch to lax.fori_loop(..., unroll=4..8) to
    #             bound vreg live ranges; at S=8 full unroll is optimal.
    w_hh = w_hh_ref[...]                            # load once, reused
    h = jnp.zeros((B, Hp), jnp.float32)
    for t in range(S):                              # static indices
        h = jnp.tanh(pre[:, t, :] +
                     jnp.dot(h, w_hh, preferred_element_type=jnp.float32))

    # ---- head on the final hidden state (lane-dense Op=128 store) ----
    # B=4 gives a masked-sublane store on this single tile — negligible.
    out_ref[...] = (jnp.dot(h, w_out_ref[...],
                            preferred_element_type=jnp.float32)
                    + b_out_ref[...]).astype(out_ref.dtype)


def _round_up(n, m):
    return ((n + m - 1) // m) * m


def sequence_model_forward(x_bsf, params):
    """x_bsf: (B, S, F) float32 (PyTorch batch_first). Returns (B, OUT)."""
    w_ih, w_hh, b_h, w_out, b_out = params
    B, S, F = x_bsf.shape
    H = w_ih.shape[1]
    O = w_out.shape[1]

    LANE = 128
    Hp = _round_up(H, LANE)
    Op = _round_up(O, LANE)

    # Zero-pad hidden/output lane dims.  Padded hidden lanes stay exactly 0
    # through the recurrence (zero weight rows/cols, zero bias, tanh(0)=0),
    # so the padded kernel is numerically identical on the first H/O lanes.
    # For large H on v6e/v7x: cast weights to bf16 here (keep f32 accumulation
    # via preferred_element_type) and set vmem_limit_bytes explicitly.
    w_ih_p = jnp.zeros((F, Hp), jnp.float32).at[:, :H].set(w_ih)
    w_hh_p = jnp.zeros((Hp, Hp), jnp.float32).at[:H, :H].set(w_hh)
    b_h_p = jnp.zeros((1, Hp), jnp.float32).at[:, :H].set(b_h)
    w_out_p = jnp.zeros((Hp, Op), jnp.float32).at[:H, :O].set(w_out)
    b_out_p = jnp.zeros((1, Op), jnp.float32).at[:, :O].set(b_out)

    # Single invocation: whole x + weights resident in VMEM, recurrence runs
    # as an in-kernel loop.  For large B on v7x, add a leading "parallel"
    # batch grid axis so both TensorCores run independent batch shards.
    grid_spec = pltpu.PrefetchScalarGridSpec(
        num_scalar_prefetch=0,
        grid=(1,),
        in_specs=[
            pl.BlockSpec((B, S, F), lambda i: (0, 0, 0)),   # whole x, no transpose
            pl.BlockSpec((F, Hp), lambda i: (0, 0)),        # W_ih (resident)
            pl.BlockSpec((Hp, Hp), lambda i: (0, 0)),       # W_hh
            pl.BlockSpec((1, Hp), lambda i: (0, 0)),        # b_h
            pl.BlockSpec((Hp, Op), lambda i: (0, 0)),       # W_out
            pl.BlockSpec((1, Op), lambda i: (0, 0)),        # b_out
        ],
        out_specs=pl.BlockSpec((B, Op), lambda i: (0, 0)),
    )

    y_p = pl.pallas_call(
        _rnn_kernel,
        out_shape=jax.ShapeDtypeStruct((B, Op), jnp.float32),
        grid_spec=grid_spec,
        compiler_params=pltpu.CompilerParams(
            dimension_semantics=("arbitrary",)),      # recurrence is serial
    )(x_bsf, w_ih_p, w_hh_p, b_h_p, w_out_p, b_out_p)

    return y_p[:, :O]


def _reference_forward(x_bsf, params):
    """Pure-JAX reference (lax.scan) for correctness check."""
    w_ih, w_hh, b_h, w_out, b_out = params
    x = jnp.transpose(x_bsf, (1, 0, 2))               # (S, B, F)
    B = x.shape[1]
    H = w_ih.shape[1]

    def step(h, x_t):
        h_new = jnp.tanh(x_t @ w_ih + h @ w_hh + b_h)
        return h_new, None

    h0 = jnp.zeros((B, H), jnp.float32)
    h_last, _ = lax.scan(step, h0, x)
    return h_last @ w_out + b_out


def init_params(key, in_dim, hid_dim, out_dim):
    k1, k2, k3, k4 = jax.random.split(key, 4)
    w_ih = jax.random.normal(k1, (in_dim, hid_dim), jnp.float32) * 0.1
    w_hh = jax.random.normal(k2, (hid_dim, hid_dim), jnp.float32) * 0.1
    b_h = jnp.zeros((1, hid_dim), jnp.float32)
    w_out = jax.random.normal(k3, (hid_dim, out_dim), jnp.float32) * 0.1
    b_out = jax.random.normal(k4, (1, out_dim), jnp.float32) * 0.1
    return w_ih, w_hh, b_h, w_out, b_out


if __name__ == "__main__":
    B, S, F, H, O = 4, 8, 16, 32, 8
    key = jax.random.PRNGKey(0)
    kx, kp = jax.random.split(key)
    x = jax.random.normal(kx, (B, S, F), jnp.float32)
    params = init_params(kp, F, H, O)

    y = jax.block_until_ready(sequence_model_forward(x, params))
    y_ref = jax.block_until_ready(_reference_forward(x, params))

    assert y.shape == (B, O)
    assert jnp.allclose(y, y_ref, atol=1e-4, rtol=1e-4), "mismatch vs reference"

    print("KERNEL_OK")
</pallas_src>

<mosaic_0001>
module attributes {stable_mosaic.version = 11 : i64} {
  func.func @_rnn_kernel(%arg0: i32, %arg1: memref<4x8x16xf32, #tpu.memory_space<vmem>>, %arg2: memref<16x128xf32, #tpu.memory_space<vmem>>, %arg3: memref<128x128xf32, #tpu.memory_space<vmem>>, %arg4: memref<1x128xf32, #tpu.memory_space<vmem>>, %arg5: memref<128x128xf32, #tpu.memory_space<vmem>>, %arg6: memref<1x128xf32, #tpu.memory_space<vmem>>, %arg7: memref<4x128xf32, #tpu.memory_space<vmem>>) attributes {dimension_semantics = [#tpu.dimension_semantics<arbitrary>], iteration_bounds = array<i64: 1>, scalar_prefetch = 0 : i64, scratch_operands = 0 : i64, tpu.core_type = #tpu.core_type<tc>, window_params = [{pipeline_mode = #tpu.pipeline_mode<synchronous>, transform_indices = @transform_0, window_bounds = array<i64: 4, 8, 16>}, {pipeline_mode = #tpu.pipeline_mode<synchronous>, transform_indices = @transform_1, window_bounds = array<i64: 16, 128>}, {pipeline_mode = #tpu.pipeline_mode<synchronous>, transform_indices = @transform_2, window_bounds = array<i64: 128, 128>}, {pipeline_mode = #tpu.pipeline_mode<synchronous>, transform_indices = @transform_3, window_bounds = array<i64: 1, 128>}, {pipeline_mode = #tpu.pipeline_mode<synchronous>, transform_indices = @transform_4, window_bounds = array<i64: 128, 128>}, {pipeline_mode = #tpu.pipeline_mode<synchronous>, transform_indices = @transform_5, window_bounds = array<i64: 1, 128>}, {pipeline_mode = #tpu.pipeline_mode<synchronous>, transform_indices = @transform_6, window_bounds = array<i64: 4, 128>}]} {
    %c0 = arith.constant 0 : index
    %c0_0 = arith.constant 0 : index
    %c0_1 = arith.constant 0 : index
    %0 = vector.load %arg1[%c0, %c0_0, %c0_1] : memref<4x8x16xf32, #tpu.memory_space<vmem>>, vector<4x8x16xf32>
    %1 = vector.shape_cast %0 : vector<4x8x16xf32> to vector<32x16xf32>
    %c0_2 = arith.constant 0 : index
    %c0_3 = arith.constant 0 : index
    %2 = vector.load %arg2[%c0_2, %c0_3] : memref<16x128xf32, #tpu.memory_space<vmem>>, vector<16x128xf32>
    %cst = arith.constant dense<0.000000e+00> : vector<32x128xf32>
    %3 = tpu.matmul %1, %2, %cst {dimension_numbers = #tpu.dot_dimension_numbers<[1], [0], [0], [1], [0, 0, 1, 1], [], []>} : vector<32x16xf32>, vector<16x128xf32>, vector<32x128xf32> -> vector<32x128xf32>
    %c0_4 = arith.constant 0 : index
    %c0_5 = arith.constant 0 : index
    %4 = vector.load %arg4[%c0_4, %c0_5] : memref<1x128xf32, #tpu.memory_space<vmem>>, vector<1x128xf32>
    %5 = vector.broadcast %4 : vector<1x128xf32> to vector<32x128xf32>
    %6 = arith.addf %3, %5 : vector<32x128xf32>
    %7 = vector.shape_cast %6 : vector<32x128xf32> to vector<4x8x128xf32>
    %c0_6 = arith.constant 0 : index
    %c0_7 = arith.constant 0 : index
    %8 = vector.load %arg3[%c0_6, %c0_7] : memref<128x128xf32, #tpu.memory_space<vmem>>, vector<128x128xf32>
    %cst_8 = arith.constant 0.000000e+00 : f32
    %9 = vector.broadcast %cst_8 : f32 to vector<4x128xf32>
    %10 = vector.extract_strided_slice %7 {offsets = [0, 0, 0], sizes = [4, 1, 128], strides = [1, 1, 1]} : vector<4x8x128xf32> to vector<4x1x128xf32>
    %11 = vector.shape_cast %10 : vector<4x1x128xf32> to vector<4x128xf32>
    %cst_9 = arith.constant dense<0.000000e+00> : vector<4x128xf32>
    %12 = tpu.matmul %9, %8, %cst_9 {dimension_numbers = #tpu.dot_dimension_numbers<[1], [0], [0], [1], [0, 0, 1, 1], [], []>} : vector<4x128xf32>, vector<128x128xf32>, vector<4x128xf32> -> vector<4x128xf32>
    %13 = arith.addf %11, %12 : vector<4x128xf32>
    %14 = math.tanh %13 : vector<4x128xf32>
    %15 = vector.extract_strided_slice %7 {offsets = [0, 1, 0], sizes = [4, 1, 128], strides = [1, 1, 1]} : vector<4x8x128xf32> to vector<4x1x128xf32>
    %16 = vector.shape_cast %15 : vector<4x1x128xf32> to vector<4x128xf32>
    %cst_10 = arith.constant dense<0.000000e+00> : vector<4x128xf32>
    %17 = tpu.matmul %14, %8, %cst_10 {dimension_numbers = #tpu.dot_dimension_numbers<[1], [0], [0], [1], [0, 0, 1, 1], [], []>} : vector<4x128xf32>, vector<128x128xf32>, vector<4x128xf32> -> vector<4x128xf32>
    %18 = arith.addf %16, %17 : vector<4x128xf32>
    %19 = math.tanh %18 : vector<4x128xf32>
    %20 = vector.extract_strided_slice %7 {offsets = [0, 2, 0], sizes = [4, 1, 128], strides = [1, 1, 1]} : vector<4x8x128xf32> to vector<4x1x128xf32>
    %21 = vector.shape_cast %20 : vector<4x1x128xf32> to vector<4x128xf32>
    %cst_11 = arith.constant dense<0.000000e+00> : vector<4x128xf32>
    %22 = tpu.matmul %19, %8, %cst_11 {dimension_numbers = #tpu.dot_dimension_numbers<[1], [0], [0], [1], [0, 0, 1, 1], [], []>} : vector<4x128xf32>, vector<128x128xf32>, vector<4x128xf32> -> vector<4x128xf32>
    %23 = arith.addf %21, %22 : vector<4x128xf32>
    %24 = math.tanh %23 : vector<4x128xf32>
    %25 = vector.extract_strided_slice %7 {offsets = [0, 3, 0], sizes = [4, 1, 128], strides = [1, 1, 1]} : vector<4x8x128xf32> to vector<4x1x128xf32>
    %26 = vector.shape_cast %25 : vector<4x1x128xf32> to vector<4x128xf32>
    %cst_12 = arith.constant dense<0.000000e+00> : vector<4x128xf32>
    %27 = tpu.matmul %24, %8, %cst_12 {dimension_numbers = #tpu.dot_dimension_numbers<[1], [0], [0], [1], [0, 0, 1, 1], [], []>} : vector<4x128xf32>, vector<128x128xf32>, vector<4x128xf32> -> vector<4x128xf32>
    %28 = arith.addf %26, %27 : vector<4x128xf32>
    %29 = math.tanh %28 : vector<4x128xf32>
    %30 = vector.extract_strided_slice %7 {offsets = [0, 4, 0], sizes = [4, 1, 128], strides = [1, 1, 1]} : vector<4x8x128xf32> to vector<4x1x128xf32>
    %31 = vector.shape_cast %30 : vector<4x1x128xf32> to vector<4x128xf32>
    %cst_13 = arith.constant dense<0.000000e+00> : vector<4x128xf32>
    %32 = tpu.matmul %29, %8, %cst_13 {dimension_numbers = #tpu.dot_dimension_numbers<[1], [0], [0], [1], [0, 0, 1, 1], [], []>} : vector<4x128xf32>, vector<128x128xf32>, vector<4x128xf32> -> vector<4x128xf32>
    %33 = arith.addf %31, %32 : vector<4x128xf32>
    %34 = math.tanh %33 : vector<4x128xf32>
    %35 = vector.extract_strided_slice %7 {offsets = [0, 5, 0], sizes = [4, 1, 128], strides = [1, 1, 1]} : vector<4x8x128xf32> to vector<4x1x128xf32>
    %36 = vector.shape_cast %35 : vector<4x1x128xf32> to vector<4x128xf32>
    %cst_14 = arith.constant dense<0.000000e+00> : vector<4x128xf32>
    %37 = tpu.matmul %34, %8, %cst_14 {dimension_numbers = #tpu.dot_dimension_numbers<[1], [0], [0], [1], [0, 0, 1, 1], [], []>} : vector<4x128xf32>, vector<128x128xf32>, vector<4x128xf32> -> vector<4x128xf32>
    %38 = arith.addf %36, %37 : vector<4x128xf32>
    %39 = math.tanh %38 : vector<4x128xf32>
    %40 = vector.extract_strided_slice %7 {offsets = [0, 6, 0], sizes = [4, 1, 128], strides = [1, 1, 1]} : vector<4x8x128xf32> to vector<4x1x128xf32>
    %41 = vector.shape_cast %40 : vector<4x1x128xf32> to vector<4x128xf32>
    %cst_15 = arith.constant dense<0.000000e+00> : vector<4x128xf32>
    %42 = tpu.matmul %39, %8, %cst_15 {dimension_numbers = #tpu.dot_dimension_numbers<[1], [0], [0], [1], [0, 0, 1, 1], [], []>} : vector<4x128xf32>, vector<128x128xf32>, vector<4x128xf32> -> vector<4x128xf32>
    %43 = arith.addf %41, %42 : vector<4x128xf32>
    %44 = math.tanh %43 : vector<4x128xf32>
    %45 = vector.extract_strided_slice %7 {offsets = [0, 7, 0], sizes = [4, 1, 128], strides = [1, 1, 1]} : vector<4x8x128xf32> to vector<4x1x128xf32>
    %46 = vector.shape_cast %45 : vector<4x1x128xf32> to vector<4x128xf32>
    %cst_16 = arith.constant dense<0.000000e+00> : vector<4x128xf32>
    %47 = tpu.matmul %44, %8, %cst_16 {dimension_numbers = #tpu.dot_dimension_numbers<[1], [0], [0], [1], [0, 0, 1, 1], [], []>} : vector<4x128xf32>, vector<128x128xf32>, vector<4x128xf32> -> vector<4x128xf32>
    %48 = arith.addf %46, %47 : vector<4x128xf32>
    %49 = math.tanh %48 : vector<4x128xf32>
    %c0_17 = arith.constant 0 : index
    %c0_18 = arith.constant 0 : index
    %50 = vector.load %arg5[%c0_17, %c0_18] : memref<128x128xf32, #tpu.memory_space<vmem>>, vector<128x128xf32>
    %cst_19 = arith.constant dense<0.000000e+00> : vector<4x128xf32>
    %51 = tpu.matmul %49, %50, %cst_19 {dimension_numbers = #tpu.dot_dimension_numbers<[1], [0], [0], [1], [0, 0, 1, 1], [], []>} : vector<4x128xf32>, vector<128x128xf32>, vector<4x128xf32> -> vector<4x128xf32>
    %c0_20 = arith.constant 0 : index
    %c0_21 = arith.constant 0 : index
    %52 = vector.load %arg6[%c0_20, %c0_21] : memref<1x128xf32, #tpu.memory_space<vmem>>, vector<1x128xf32>
    %53 = vector.broadcast %52 : vector<1x128xf32> to vector<4x128xf32>
    %54 = arith.addf %51, %53 : vector<4x128xf32>
    %c0_22 = arith.constant 0 : index
    %c0_23 = arith.constant 0 : index
    %55 = vector.load %arg7[%c0_22, %c0_23] : memref<4x128xf32, #tpu.memory_space<vmem>>, vector<4x128xf32>
    tpu.vector_store %arg7[%c0_22, %c0_23], %54 {strides = array<i32>} : memref<4x128xf32, #tpu.memory_space<vmem>>, vector<4x128xf32>,
    return
  }
  func.func @transform_0(%arg0: i32) -> (i32, i32, i32) {
    %c0_i32 = arith.constant 0 : i32
    %c0_i32_0 = arith.constant 0 : i32
    %c0_i32_1 = arith.constant 0 : i32
    %c0_i32_2 = arith.constant 0 : i32
    return %c0_i32, %c0_i32_0, %c0_i32_1 : i32, i32, i32
  }
  func.func @transform_1(%arg0: i32) -> (i32, i32) {
    %c0_i32 = arith.constant 0 : i32
    %c0_i32_0 = arith.constant 0 : i32
    %c0_i32_1 = arith.constant 0 : i32
    return %c0_i32, %c0_i32_0 : i32, i32
  }
  func.func @transform_2(%arg0: i32) -> (i32, i32) {
    %c0_i32 = arith.constant 0 : i32
    %c0_i32_0 = arith.constant 0 : i32
    %c0_i32_1 = arith.constant 0 : i32
    return %c0_i32, %c0_i32_0 : i32, i32
  }
  func.func @transform_3(%arg0: i32) -> (i32, i32) {
    %c0_i32 = arith.constant 0 : i32
    %c0_i32_0 = arith.constant 0 : i32
    %c0_i32_1 = arith.constant 0 : i32
    return %c0_i32, %c0_i32_0 : i32, i32
  }
  func.func @transform_4(%arg0: i32) -> (i32, i32) {
    %c0_i32 = arith.constant 0 : i32
    %c0_i32_0 = arith.constant 0 : i32
    %c0_i32_1 = arith.constant 0 : i32
    return %c0_i32, %c0_i32_0 : i32, i32
  }
  func.func @transform_5(%arg0: i32) -> (i32, i32) {
    %c0_i32 = arith.constant 0 : i32
    %c0_i32_0 = arith.constant 0 : i32
    %c0_i32_1 = arith.constant 0 : i32
    return %c0_i32, %c0_i32_0 : i32, i32
  }
  func.func @transform_6(%arg0: i32) -> (i32, i32) {
    %c0_i32 = arith.constant 0 : i32
    %c0_i32_0 = arith.constant 0 : i32
    %c0_i32_1 = arith.constant 0 : i32
    return %c0_i32, %c0_i32_0 : i32, i32
  }
}

</mosaic_0001>

<llo_original>
// kernel: tpu_custom_call.1
$region0: #{tpu_custom_call.1}
  #allocation0 [shape = 'u32[]', space=smem, size = 0x4, offset = 0x4, fixed_abs, tag = 'smem constant byte address 0x4 - core index']
  #allocation1 [shape = 'u32[72,128]{1,0:T(1,128)}', space=vmem, size = 0x9000, scoped, tag = 'internal scratch']
  %s0 = inlined_call_operand.hbm [shape: f32[4,8,16], index: 0, kind: input, shape index: {}]
  %s1 = inlined_call_operand.hbm [shape: f32[16,128], index: 1, kind: input, shape index: {}]
  %s2 = inlined_call_operand.hbm [shape: f32[128,128], index: 2, kind: input, shape index: {}]
  %s3 = inlined_call_operand.vmem [shape: f32[1,128], index: 3, kind: input, shape index: {}]
  %s4 = inlined_call_operand.hbm [shape: f32[128,128], index: 4, kind: input, shape index: {}]
  %s5 = inlined_call_operand.vmem [shape: f32[1,128], index: 5, kind: input, shape index: {}]
  %s6 = inlined_call_operand.hbm [shape: f32[4,128], index: 6, kind: output, shape index: {}]
  %s7 = sld [smem:[#allocation0]]
  $region50: #{tpu_custom_call.1} parent=0
    _
  %s9 = ssub.s32 1, %s7
  %s10 = scalar_select 0, %s9, %s7
  $region1: #{tpu_custom_call.1} parent=0
    #allocation2 [shape = 'u8[16384]{0}', space=vmem, size = 0x4000, scoped, tag = 'input window, operand 0, single buffered']
    #allocation3 [shape = 's32[1]{0}', space=sflag, size = 0x4, scoped, tag = 'scoped memory for tpu_custom_call.1']
    #allocation4 [shape = 's32[1]{0}', space=sflag, size = 0x4, scoped, tag = 'scoped memory for tpu_custom_call.1']
    #allocation5 [shape = 'u8[8192]{0}', space=vmem, size = 0x2000, scoped, tag = 'input window, operand 1, single buffered']
    #allocation6 [shape = 's32[1]{0}', space=sflag, size = 0x4, scoped, tag = 'scoped memory for tpu_custom_call.1']
    #allocation7 [shape = 'u8[65536]{0}', space=vmem, size = 0x10000, scoped, tag = 'input window, operand 2, single buffered']
    #allocation8 [shape = 'u8[65536]{0}', space=vmem, size = 0x10000, scoped, tag = 'input window, operand 4, single buffered']
    #allocation9 [shape = 's32[1]{0}', space=sflag, size = 0x4, scoped, tag = 'scoped memory for tpu_custom_call.1']
    #allocation10 [shape = 'u8[2048]{0}', space=vmem, size = 0x800, scoped, tag = 'output window, operand 0, single buffered']
    %11 = vsyncpa [#allocation3], 0
    %12 = vsyncpa [#allocation6], 0
    %13 = vsyncpa [#allocation9], 0
    %14 = vsyncpa [#allocation4], 0
    // Predicated region
    $region2: #{tpu_custom_call.1} parent=1 // pred_check
      _
    $region3: #{tpu_custom_call.1} parent=1 // pred_check_branch
      %16 = sbr.rel (0) target = $region5
    $region4: #{tpu_custom_call.1} parent=1 // pred_region
      %18 = vsyncadd [#allocation3], 0
      %s19 = sshll.u32 %s0, 4
      %s20 = int_to_ptr.hbm [resolvable:$true] %s19
      %s21 = sshll.u32 [#allocation2], 4
      %s22 = int_to_ptr.vmem [resolvable:$true] %s21
      %27 = dma.hbm_to_vmem [thread:$0]  %s20, 512, %s22, [#allocation3], 128, 128, 8
    $region5: #{tpu_custom_call.1} parent=1 // pred_fallthru
      _
    // Predicated region
    $region6: #{tpu_custom_call.1} parent=1 // pred_check
      _
    $region7: #{tpu_custom_call.1} parent=1 // pred_check_branch
      %29 = sbr.rel (0) target = $region9
    $region8: #{tpu_custom_call.1} parent=1 // pred_region
      %31 = vsyncadd [#allocation6], 0
      %s32 = sshll.u32 %s1, 4
      %s33 = int_to_ptr.hbm [resolvable:$true] %s32
      %s34 = sshll.u32 [#allocation5], 4
      %s35 = int_to_ptr.vmem [resolvable:$true] %s34
      %40 = dma.hbm_to_vmem [thread:$0]  %s33, 256, %s35, [#allocation6], 128, 128, 8
    $region9: #{tpu_custom_call.1} parent=1 // pred_fallthru
      _
    // Predicated region
    $region10: #{tpu_custom_call.1} parent=1 // pred_check
      _
    $region11: #{tpu_custom_call.1} parent=1 // pred_check_branch
      %42 = sbr.rel (0) target = $region13
    $region12: #{tpu_custom_call.1} parent=1 // pred_region
      %44 = vsyncadd [#allocation6], 0
      %s45 = sshll.u32 %s2, 4
      %s46 = int_to_ptr.hbm [resolvable:$true] %s45
      %s47 = sshll.u32 [#allocation7], 4
      %s48 = int_to_ptr.vmem [resolvable:$true] %s47
      %53 = dma.hbm_to_vmem [thread:$0]  %s46, 2048, %s48, [#allocation6], 128, 128, 8
    $region13: #{tpu_custom_call.1} parent=1 // pred_fallthru
      _
    // Predicated region
    $region14: #{tpu_custom_call.1} parent=1 // pred_check
      _
    $region15: #{tpu_custom_call.1} parent=1 // pred_check_branch
      %55 = sbr.rel (0) target = $region17
    $region16: #{tpu_custom_call.1} parent=1 // pred_region
      _
    $region17: #{tpu_custom_call.1} parent=1 // pred_fallthru
      _
    // Predicated region
    $region18: #{tpu_custom_call.1} parent=1 // pred_check
      _
    $region19: #{tpu_custom_call.1} parent=1 // pred_check_branch
      %57 = sbr.rel (0) target = $region21
    $region20: #{tpu_custom_call.1} parent=1 // pred_region
      %59 = vsyncadd [#allocation9], 0
      %s60 = sshll.u32 %s4, 4
      %s61 = int_to_ptr.hbm [resolvable:$true] %s60
      %s62 = sshll.u32 [#allocation8], 4
      %s63 = int_to_ptr.vmem [resolvable:$true] %s62
      %68 = dma.hbm_to_vmem [thread:$0]  %s61, 2048, %s63, [#allocation9], 128, 128, 8
    $region21: #{tpu_custom_call.1} parent=1 // pred_fallthru
      _
    // Predicated region
    $region22: #{tpu_custom_call.1} parent=1 // pred_check
      _
    $region23: #{tpu_custom_call.1} parent=1 // pred_check_branch
      %70 = sbr.rel (0) target = $region25
    $region24: #{tpu_custom_call.1} parent=1 // pred_region
      _
    $region25: #{tpu_custom_call.1} parent=1 // pred_fallthru
      _
    // Predicated region
    $region26: #{tpu_custom_call.1} parent=1 // pred_check
      _
    $region27: #{tpu_custom_call.1} parent=1 // pred_check_branch
      %72 = sbr.rel (0) target = $region29
    $region28: #{tpu_custom_call.1} parent=1 // pred_region
      %74 = dma.done [#allocation3], 512
    $region29: #{tpu_custom_call.1} parent=1 // pred_fallthru
      _
    // Predicated region
    $region30: #{tpu_custom_call.1} parent=1 // pred_check
      _
    $region31: #{tpu_custom_call.1} parent=1 // pred_check_branch
      %76 = sbr.rel (0) target = $region33
    $region32: #{tpu_custom_call.1} parent=1 // pred_region
      %78 = dma.done [#allocation6], 256
    $region33: #{tpu_custom_call.1} parent=1 // pred_fallthru
      _
    // Predicated region
    $region34: #{tpu_custom_call.1} parent=1 // pred_check
      _
    $region35: #{tpu_custom_call.1} parent=1 // pred_check_branch
      %80 = sbr.rel (0) target = $region37
    $region36: #{tpu_custom_call.1} parent=1 // pred_region
      %82 = dma.done [#allocation6], 2048
    $region37: #{tpu_custom_call.1} parent=1 // pred_fallthru
      _
    // Predicated region
    $region38: #{tpu_custom_call.1} parent=1 // pred_check
      _
    $region39: #{tpu_custom_call.1} parent=1 // pred_check_branch
      %84 = sbr.rel (0) target = $region41
    $region40: #{tpu_custom_call.1} parent=1 // pred_region
      %86 = dma.done [#allocation9], 2048
    $region41: #{tpu_custom_call.1} parent=1 // pred_fallthru
      _
    %v87 = vld [vmem:[#allocation2] sm:$0xff]
    %v88 = vld [vmem:[#allocation2 + $0x8] sm:$0xff]
    %v89 = vld [vmem:[#allocation2 + $0x10] sm:$0xff]
    %v90 = vld [vmem:[#allocation2 + $0x18] sm:$0xff]
    %v91 = vld [vmem:[#allocation5] sm:$0xff]
    %v92 = vld [vmem:[#allocation5 + $0x8] sm:$0xff]
    %v93 = vld [vmem:[%s3] sm:$0x1]
    %v95 = vperm.slane %v93, 0
    %vm97 = vcmask 130048
    %v99 = vsel %vm97, %v87, 0
    %v102 = vsel %vm97, %v88, 0
    %v105 = vsel %vm97, %v89, 0
    %v108 = vsel %vm97, %v90, 0
    %110 = vmatpush.msra.mxu0 0.0
    %111 = vmatpush.msra.mxu0 0.0
    %112 = vmatpush.msra.mxu0 0.0
    %113 = vmatpush.msra.mxu0 0.0
    %114 = vmatpush.msra.mxu0 0.0
    %115 = vmatpush.msra.mxu0 0.0
    %116 = vmatpush.msra.mxu0 0.0
    %117 = vmatpush.msra.mxu0 0.0
    %118 = vmatpush.msra.mxu0 0.0
    %119 = vmatpush.msra.mxu0 0.0
    %120 = vmatpush.msra.mxu0 0.0
    %121 = vmatpush.msra.mxu0 0.0
    %122 = vmatpush.msra.mxu0 0.0
    %123 = vmatpush.msra.mxu0 0.0
    %124 = vmatpush.msra.mxu0 %v92
    %125 = vmatpush.msra.mxu0 %v91
    %126 = vmatmul.f32.gmra.mxu0 %v99
    %v127 = vpop.f32.mrf.mxu0
    %v128 = vadd.f32 %v95, %v127
    %129 = vmatmul.f32.gmra.mxu0 %v102
    %v130 = vpop.f32.mrf.mxu0
    %v131 = vadd.f32 %v95, %v130
    %132 = vmatmul.f32.gmra.mxu0 %v105
    %v133 = vpop.f32.mrf.mxu0
    %v134 = vadd.f32 %v95, %v133
    %135 = vmatmul.f32.gmra.mxu0 %v108
    %v136 = vpop.f32.mrf.mxu0
    %v137 = vadd.f32 %v95, %v136
    %138 = vdwg.mxu0
    %v139 = vld [vmem:[#allocation7] sm:$0xff]
    %v140 = vld [vmem:[#allocation7 + $0x8] sm:$0xff]
    %v141 = vld [vmem:[#allocation7 + $0x10] sm:$0xff]
    %v142 = vld [vmem:[#allocation7 + $0x18] sm:$0xff]
    %v143 = vld [vmem:[#allocation7 + $0x20] sm:$0xff]
    %v144 = vld [vmem:[#allocation7 + $0x28] sm:$0xff]
    %v145 = vld [vmem:[#allocation7 + $0x30] sm:$0xff]
    %v146 = vld [vmem:[#allocation7 + $0x38] sm:$0xff]
    %v147 = vld [vmem:[#allocation7 + $0x40] sm:$0xff]
    %v148 = vld [vmem:[#allocation7 + $0x48] sm:$0xff]
    %v149 = vld [vmem:[#allocation7 + $0x50] sm:$0xff]
    %v150 = vld [vmem:[#allocation7 + $0x58] sm:$0xff]
    %v151 = vld [vmem:[#allocation7 + $0x60] sm:$0xff]
    %v152 = vld [vmem:[#allocation7 + $0x68] sm:$0xff]
    %v153 = vld [vmem:[#allocation7 + $0x70] sm:$0xff]
    %v154 = vld [vmem:[#allocation7 + $0x78] sm:$0xff]
    %155 = vmatpush.msra.mxu0 %v154
    %156 = vmatpush.msra.mxu0 %v153
    %157 = vmatpush.msra.mxu0 %v152
    %158 = vmatpush.msra.mxu0 %v151
    %159 = vmatpush.msra.mxu0 %v150
    %160 = vmatpush.msra.mxu0 %v149
    %161 = vmatpush.msra.mxu0 %v148
    %162 = vmatpush.msra.mxu0 %v147
    %163 = vmatpush.msra.mxu0 %v146
    %164 = vmatpush.msra.mxu0 %v145
    %165 = vmatpush.msra.mxu0 %v144
    %166 = vmatpush.msra.mxu0 %v143
    %167 = vmatpush.msra.mxu0 %v142
    %168 = vmatpush.msra.mxu0 %v141
    %169 = vmatpush.msra.mxu0 %v140
    %170 = vmatpush.msra.mxu0 %v139
    %171 = vmatmul.f32.gmra.mxu0 0.0
    %v172 = vpop.f32.mrf.mxu0
    %v173 = vadd.f32 0.0, %v172
    %174 = vdwg.mxu0
    %v176 = vrot.slane %v173, 1
    %v177 = vrot.slane %v173, 2
    %v178 = vrot.slane %v173, 3
    %v183 = vadd.f32 %v128, %v173
    %v184 = vadd.f32 %v131, %v176
    %v185 = vadd.f32 %v134, %v177
    %v186 = vadd.f32 %v137, %v178
    %v187 = vtanh.pop %v183
    %v188 = vtanh.pop %v184
    %v189 = vtanh.pop %v185
    %v190 = vtanh.pop %v186
    %v195 = vrot.slane %v188, 7
    %vm196 = vcmask 1041409
    %v197 = vsel %vm196, %v195, %v187
    %v198 = vrot.slane %v189, 6
    %vm199 = vcmask 1042434
    %v200 = vsel %vm199, %v198, %v197
    %v201 = vrot.slane %v190, 5
    %vm202 = vcmask 1043459
    %v203 = vsel %vm202, %v201, %v200
    %205 = vmatpush.msra.mxu0 %v154
    %206 = vmatpush.msra.mxu0 %v153
    %207 = vmatpush.msra.mxu0 %v152
    %208 = vmatpush.msra.mxu0 %v151
    %209 = vmatpush.msra.mxu0 %v150
    %210 = vmatpush.msra.mxu0 %v149
    %211 = vmatpush.msra.mxu0 %v148
    %212 = vmatpush.msra.mxu0 %v147
    %213 = vmatpush.msra.mxu0 %v146
    %214 = vmatpush.msra.mxu0 %v145
    %215 = vmatpush.msra.mxu0 %v144
    %216 = vmatpush.msra.mxu0 %v143
    %217 = vmatpush.msra.mxu0 %v142
    %218 = vmatpush.msra.mxu0 %v141
    %219 = vmatpush.msra.mxu0 %v140
    %220 = vmatpush.msra.mxu0 %v139
    %221 = vmatmul.f32.gmra.mxu0 %v203
    %v222 = vpop.f32.mrf.mxu0
    %v223 = vadd.f32 0.0, %v222
    %224 = vdwg.mxu0
    %v226 = vrot.slane %v223, 7
    %v227 = vrot.slane %v223, 1
    %v228 = vrot.slane %v223, 2
    %v233 = vadd.f32 %v128, %v226
    %v234 = vadd.f32 %v131, %v223
    %v235 = vadd.f32 %v134, %v227
    %v236 = vadd.f32 %v137, %v228
    %v237 = vtanh.pop %v233
    %v238 = vtanh.pop %v234
    %v239 = vtanh.pop %v235
    %v240 = vtanh.pop %v236
    %v245 = vrot.slane %v237, 1
    %v246 = vsel %vm196, %v238, %v245
    %v247 = vrot.slane %v239, 7
    %v248 = vsel %vm199, %v247, %v246
    %v249 = vrot.slane %v240, 6
    %v250 = vsel %vm202, %v249, %v248
    %252 = vmatpush.msra.mxu0 %v154
    %253 = vmatpush.msra.mxu0 %v153
    %254 = vmatpush.msra.mxu0 %v152
    %255 = vmatpush.msra.mxu0 %v151
    %256 = vmatpush.msra.mxu0 %v150
    %257 = vmatpush.msra.mxu0 %v149
    %258 = vmatpush.msra.mxu0 %v148
    %259 = vmatpush.msra.mxu0 %v147
    %260 = vmatpush.msra.mxu0 %v146
    %261 = vmatpush.msra.mxu0 %v145
    %262 = vmatpush.msra.mxu0 %v144
    %263 = vmatpush.msra.mxu0 %v143
    %264 = vmatpush.msra.mxu0 %v142
    %265 = vmatpush.msra.mxu0 %v141
    %266 = vmatpush.msra.mxu0 %v140
    %267 = vmatpush.msra.mxu0 %v139
    %268 = vmatmul.f32.gmra.mxu0 %v250
    %v269 = vpop.f32.mrf.mxu0
    %v270 = vadd.f32 0.0, %v269
    %271 = vdwg.mxu0
    %v273 = vrot.slane %v270, 6
    %v274 = vrot.slane %v270, 7
    %v275 = vrot.slane %v270, 1
    %v280 = vadd.f32 %v128, %v273
    %v281 = vadd.f32 %v131, %v274
    %v282 = vadd.f32 %v134, %v270
    %v283 = vadd.f32 %v137, %v275
    %v284 = vtanh.pop %v280
    %v285 = vtanh.pop %v281
    %v286 = vtanh.pop %v282
    %v287 = vtanh.pop %v283
    %v292 = vrot.slane %v284, 2
    %v293 = vrot.slane %v285, 1
    %v294 = vsel %vm196, %v293, %v292
    %v295 = vsel %vm199, %v286, %v294
    %v296 = vrot.slane %v287, 7
    %v297 = vsel %vm202, %v296, %v295
    %299 = vmatpush.msra.mxu0 %v154
    %300 = vmatpush.msra.mxu0 %v153
    %301 = vmatpush.msra.mxu0 %v152
    %302 = vmatpush.msra.mxu0 %v151
    %303 = vmatpush.msra.mxu0 %v150
    %304 = vmatpush.msra.mxu0 %v149
    %305 = vmatpush.msra.mxu0 %v148
    %306 = vmatpush.msra.mxu0 %v147
    %307 = vmatpush.msra.mxu0 %v146
    %308 = vmatpush.msra.mxu0 %v145
    %309 = vmatpush.msra.mxu0 %v144
    %310 = vmatpush.msra.mxu0 %v143
    %311 = vmatpush.msra.mxu0 %v142
    %312 = vmatpush.msra.mxu0 %v141
    %313 = vmatpush.msra.mxu0 %v140
    %314 = vmatpush.msra.mxu0 %v139
    %315 = vmatmul.f32.gmra.mxu0 %v297
    %v316 = vpop.f32.mrf.mxu0
    %v317 = vadd.f32 0.0, %v316
    %318 = vdwg.mxu0
    %v320 = vrot.slane %v317, 5
    %v321 = vrot.slane %v317, 6
    %v322 = vrot.slane %v317, 7
    %v327 = vadd.f32 %v128, %v320
    %v328 = vadd.f32 %v131, %v321
    %v329 = vadd.f32 %v134, %v322
    %v330 = vadd.f32 %v137, %v317
    %v331 = vtanh.pop %v327
    %v332 = vtanh.pop %v328
    %v333 = vtanh.pop %v329
    %v334 = vtanh.pop %v330
    %v339 = vrot.slane %v331, 3
    %v340 = vrot.slane %v332, 2
    %v341 = vsel %vm196, %v340, %v339
    %v342 = vrot.slane %v333, 1
    %v343 = vsel %vm199, %v342, %v341
    %v344 = vsel %vm202, %v334, %v343
    %346 = vmatpush.msra.mxu0 %v154
    %347 = vmatpush.msra.mxu0 %v153
    %348 = vmatpush.msra.mxu0 %v152
    %349 = vmatpush.msra.mxu0 %v151
    %350 = vmatpush.msra.mxu0 %v150
    %351 = vmatpush.msra.mxu0 %v149
    %352 = vmatpush.msra.mxu0 %v148
    %353 = vmatpush.msra.mxu0 %v147
    %354 = vmatpush.msra.mxu0 %v146
    %355 = vmatpush.msra.mxu0 %v145
    %356 = vmatpush.msra.mxu0 %v144
    %357 = vmatpush.msra.mxu0 %v143
    %358 = vmatpush.msra.mxu0 %v142
    %359 = vmatpush.msra.mxu0 %v141
    %360 = vmatpush.msra.mxu0 %v140
    %361 = vmatpush.msra.mxu0 %v139
    %362 = vmatmul.f32.gmra.mxu0 %v344
    %v363 = vpop.f32.mrf.mxu0
    %v364 = vadd.f32 0.0, %v363
    %365 = vdwg.mxu0
    %v367 = vrot.slane %v364, 4
    %v368 = vrot.slane %v364, 5
    %v369 = vrot.slane %v364, 6
    %v370 = vrot.slane %v364, 7
    %v375 = vadd.f32 %v128, %v367
    %v376 = vadd.f32 %v131, %v368
    %v377 = vadd.f32 %v134, %v369
    %v378 = vadd.f32 %v137, %v370
    %v379 = vtanh.pop %v375
    %v380 = vtanh.pop %v376
    %v381 = vtanh.pop %v377
    %v382 = vtanh.pop %v378
    %v387 = vrot.slane %v379, 4
    %v388 = vrot.slane %v380, 3
    %v389 = vsel %vm196, %v388, %v387
    %v390 = vrot.slane %v381, 2
    %v391 = vsel %vm199, %v390, %v389
    %v392 = vrot.slane %v382, 1
    %v393 = vsel %vm202, %v392, %v391
    %395 = vmatpush.msra.mxu0 %v154
    %396 = vmatpush.msra.mxu0 %v153
    %397 = vmatpush.msra.mxu0 %v152
    %398 = vmatpush.msra.mxu0 %v151
    %399 = vmatpush.msra.mxu0 %v150
    %400 = vmatpush.msra.mxu0 %v149
    %401 = vmatpush.msra.mxu0 %v148
    %402 = vmatpush.msra.mxu0 %v147
    %403 = vmatpush.msra.mxu0 %v146
    %404 = vmatpush.msra.mxu0 %v145
    %405 = vmatpush.msra.mxu0 %v144
    %406 = vmatpush.msra.mxu0 %v143
    %407 = vmatpush.msra.mxu0 %v142
    %408 = vmatpush.msra.mxu0 %v141
    %409 = vmatpush.msra.mxu0 %v140
    %410 = vmatpush.msra.mxu0 %v139
    %411 = vmatmul.f32.gmra.mxu0 %v393
    %v412 = vpop.f32.mrf.mxu0
    %v413 = vadd.f32 0.0, %v412
    %414 = vdwg.mxu0
    %v416 = vrot.slane %v413, 3
    %v417 = vrot.slane %v413, 4
    %v418 = vrot.slane %v413, 5
    %v419 = vrot.slane %v413, 6
    %v424 = vadd.f32 %v128, %v416
    %v425 = vadd.f32 %v131, %v417
    %v426 = vadd.f32 %v134, %v418
    %v427 = vadd.f32 %v137, %v419
    %v428 = vtanh.pop %v424
    %v429 = vtanh.pop %v425
    %v430 = vtanh.pop %v426
    %v431 = vtanh.pop %v427
    %v436 = vrot.slane %v428, 5
    %v437 = vrot.slane %v429, 4
    %v438 = vsel %vm196, %v437, %v436
    %v439 = vrot.slane %v430, 3
    %v440 = vsel %vm199, %v439, %v438
    %v441 = vrot.slane %v431, 2
    %v442 = vsel %vm202, %v441, %v440
    %444 = vmatpush.msra.mxu0 %v154
    %445 = vmatpush.msra.mxu0 %v153
    %446 = vmatpush.msra.mxu0 %v152
    %447 = vmatpush.msra.mxu0 %v151
    %448 = vmatpush.msra.mxu0 %v150
    %449 = vmatpush.msra.mxu0 %v149
    %450 = vmatpush.msra.mxu0 %v148
    %451 = vmatpush.msra.mxu0 %v147
    %452 = vmatpush.msra.mxu0 %v146
    %453 = vmatpush.msra.mxu0 %v145
    %454 = vmatpush.msra.mxu0 %v144
    %455 = vmatpush.msra.mxu0 %v143
    %456 = vmatpush.msra.mxu0 %v142
    %457 = vmatpush.msra.mxu0 %v141
    %458 = vmatpush.msra.mxu0 %v140
    %459 = vmatpush.msra.mxu0 %v139
    %460 = vmatmul.f32.gmra.mxu0 %v442
    %v461 = vpop.f32.mrf.mxu0
    %v462 = vadd.f32 0.0, %v461
    %463 = vdwg.mxu0
    %v465 = vrot.slane %v462, 2
    %v466 = vrot.slane %v462, 3
    %v467 = vrot.slane %v462, 4
    %v468 = vrot.slane %v462, 5
    %v473 = vadd.f32 %v128, %v465
    %v474 = vadd.f32 %v131, %v466
    %v475 = vadd.f32 %v134, %v467
    %v476 = vadd.f32 %v137, %v468
    %v477 = vtanh.pop %v473
    %v478 = vtanh.pop %v474
    %v479 = vtanh.pop %v475
    %v480 = vtanh.pop %v476
    %v485 = vrot.slane %v477, 6
    %v486 = vrot.slane %v478, 5
    %v487 = vsel %vm196, %v486, %v485
    %v488 = vrot.slane %v479, 4
    %v489 = vsel %vm199, %v488, %v487
    %v490 = vrot.slane %v480, 3
    %v491 = vsel %vm202, %v490, %v489
    %493 = vmatpush.msra.mxu0 %v154
    %494 = vmatpush.msra.mxu0 %v153
    %495 = vmatpush.msra.mxu0 %v152
    %496 = vmatpush.msra.mxu0 %v151
    %497 = vmatpush.msra.mxu0 %v150
    %498 = vmatpush.msra.mxu0 %v149
    %499 = vmatpush.msra.mxu0 %v148
    %500 = vmatpush.msra.mxu0 %v147
    %501 = vmatpush.msra.mxu0 %v146
    %502 = vmatpush.msra.mxu0 %v145
    %503 = vmatpush.msra.mxu0 %v144
    %504 = vmatpush.msra.mxu0 %v143
    %505 = vmatpush.msra.mxu0 %v142
    %506 = vmatpush.msra.mxu0 %v141
    %507 = vmatpush.msra.mxu0 %v140
    %508 = vmatpush.msra.mxu0 %v139
    %509 = vmatmul.f32.gmra.mxu0 %v491
    %v510 = vpop.f32.mrf.mxu0
    %v511 = vadd.f32 0.0, %v510
    %512 = vdwg.mxu0
    %v514 = vrot.slane %v511, 1
    %v515 = vrot.slane %v511, 2
    %v516 = vrot.slane %v511, 3
    %v517 = vrot.slane %v511, 4
    %v522 = vadd.f32 %v128, %v514
    %v523 = vadd.f32 %v131, %v515
    %v524 = vadd.f32 %v134, %v516
    %v525 = vadd.f32 %v137, %v517
    %v526 = vtanh.pop %v522
    %v527 = vtanh.pop %v523
    %v528 = vtanh.pop %v524
    %v529 = vtanh.pop %v525
    %v530 = vld [vmem:[#allocation8] sm:$0xff]
    %v531 = vld [vmem:[#allocation8 + $0x8] sm:$0xff]
    %v532 = vld [vmem:[#allocation8 + $0x10] sm:$0xff]
    %v533 = vld [vmem:[#allocation8 + $0x18] sm:$0xff]
    %v534 = vld [vmem:[#allocation8 + $0x20] sm:$0xff]
    %v535 = vld [vmem:[#allocation8 + $0x28] sm:$0xff]
    %v536 = vld [vmem:[#allocation8 + $0x30] sm:$0xff]
    %v537 = vld [vmem:[#allocation8 + $0x38] sm:$0xff]
    %v538 = vld [vmem:[#allocation8 + $0x40] sm:$0xff]
    %v539 = vld [vmem:[#allocation8 + $0x48] sm:$0xff]
    %v540 = vld [vmem:[#allocation8 + $0x50] sm:$0xff]
    %v541 = vld [vmem:[#allocation8 + $0x58] sm:$0xff]
    %v542 = vld [vmem:[#allocation8 + $0x60] sm:$0xff]
    %v543 = vld [vmem:[#allocation8 + $0x68] sm:$0xff]
    %v544 = vld [vmem:[#allocation8 + $0x70] sm:$0xff]
    %v545 = vld [vmem:[#allocation8 + $0x78] sm:$0xff]
    %v546 = vld [vmem:[%s5] sm:$0x1]
    %v548 = vperm.slane %v546, 0
    %v554 = vrot.slane %v526, 7
    %v555 = vrot.slane %v527, 6
    %v556 = vsel %vm196, %v555, %v554
    %v557 = vrot.slane %v528, 5
    %v558 = vsel %vm199, %v557, %v556
    %v559 = vrot.slane %v529, 4
    %v560 = vsel %vm202, %v559, %v558
    %562 = vmatpush.msra.mxu0 %v545
    %563 = vmatpush.msra.mxu0 %v544
    %564 = vmatpush.msra.mxu0 %v543
    %565 = vmatpush.msra.mxu0 %v542
    %566 = vmatpush.msra.mxu0 %v541
    %567 = vmatpush.msra.mxu0 %v540
    %568 = vmatpush.msra.mxu0 %v539
    %569 = vmatpush.msra.mxu0 %v538
    %570 = vmatpush.msra.mxu0 %v537
    %571 = vmatpush.msra.mxu0 %v536
    %572 = vmatpush.msra.mxu0 %v535
    %573 = vmatpush.msra.mxu0 %v534
    %574 = vmatpush.msra.mxu0 %v533
    %575 = vmatpush.msra.mxu0 %v532
    %576 = vmatpush.msra.mxu0 %v531
    %577 = vmatpush.msra.mxu0 %v530
    %578 = vmatmul.f32.gmra.mxu0 %v560
    %v579 = vpop.f32.mrf.mxu0
    %v580 = vadd.f32 %v548, %v579
    %581 = vdwg.mxu0
    %582 = vst [vmem:[#allocation10] sm:$0xf] %v580
    // Predicated region
    $region42: #{tpu_custom_call.1} parent=1 // pred_check
      _
    $region43: #{tpu_custom_call.1} parent=1 // pred_check_branch
      %584 = sbr.rel (0) target = $region45
    $region44: #{tpu_custom_call.1} parent=1 // pred_region
      %586 = vsyncadd [#allocation4], 0
      %s588 = sshll.u32 [#allocation10], 4
      %s589 = int_to_ptr.vmem [resolvable:$true] %s588
      %s590 = sshll.u32 %s6, 4
      %s591 = int_to_ptr.hbm [resolvable:$true] %s590
      %593 = dma.vmem_to_hbm [thread:$0]  %s589, 64, %s591, [#allocation4]
    $region45: #{tpu_custom_call.1} parent=1 // pred_fallthru
      _
    // Predicated region
    $region46: #{tpu_custom_call.1} parent=1 // pred_check
      _
    $region47: #{tpu_custom_call.1} parent=1 // pred_check_branch
      %595 = sbr.rel (0) target = $region49
    $region48: #{tpu_custom_call.1} parent=1 // pred_region
      %597 = dma.done [#allocation4], 64
    $region49: #{tpu_custom_call.1} parent=1 // pred_fallthru
      _
    %598 = vsyncpa [#allocation3], 1
    %599 = vsyncpa [#allocation6], 1
    %600 = vsyncpa [#allocation9], 1
    %601 = vsyncpa [#allocation4], 1

</llo_original>
